<compile_context>
chip_gen: v7x
topology: tpu7x:2x2x1
jax: 0.10.0
libtpu: 0.0.40
codegen_flags: <defaults>
</compile_context>

<pallas_src>
import functools

import jax
import jax.numpy as jnp
from jax import lax
from jax.experimental import pallas as pl
from jax.experimental.pallas import tpu as pltpu

LEAKY_SLOPE = 0.5   # nn.LeakyReLU(0.5)
BN_EPS = 1e-5       # nn.BatchNorm1d default eps


def _round_up(n, m):
    return (n + m - 1) // m * m


def _leaky_relu(x):
    # slope < 1  =>  leaky_relu(x) == max(x, slope * x)
    return jnp.maximum(x, LEAKY_SLOPE * x)


def _msblock_kernel(x_ref, vec_ref, w_ref, wf_ref, bf_ref, o_ref,
                    *, n_valid, mm_dtype):
    """Whole MSBlock forward on one VMEM-resident block.

    x_ref   : (Bp, Hp) f32        activations (batch padded to mult. of 8)
    vec_ref : (9, Hp)  f32        rows = [g1,be1,b1, g2,be2,b2, g3,be3,b3]
    w_ref   : (3, Hp, Hp) mm_dtype  residual Linear weights (in, out)
    wf_ref  : (Hp, Op) mm_dtype     final Linear weight (in, out), lane-padded
    bf_ref  : (1, Op)  f32          final Linear bias, lane-padded
    o_ref   : (Bp, Op) f32
    """
    x = x_ref[...]
    bp = x.shape[0]
    inv_n = jnp.float32(1.0 / n_valid)

    if n_valid == bp:
        row_mask = None                      # no batch padding -> no masking
    else:
        rows = lax.broadcasted_iota(jnp.int32, (bp, 1), 0)
        row_mask = rows < n_valid

    out = x
    for blk in range(3):
        gamma = vec_ref[pl.ds(3 * blk + 0, 1), :]    # (1, Hp)
        beta = vec_ref[pl.ds(3 * blk + 1, 1), :]     # (1, Hp)
        bias = vec_ref[pl.ds(3 * blk + 2, 1), :]     # (1, Hp)

        # One-pass batch statistics over the true batch rows only.
        xm = out if row_mask is None else jnp.where(row_mask, out, 0.0)
        s1 = jnp.sum(xm, axis=0, keepdims=True)
        s2 = jnp.sum(xm * xm, axis=0, keepdims=True)
        mean = s1 * inv_n
        var = jnp.maximum(s2 * inv_n - mean * mean, 0.0)   # biased variance

        # Folded BatchNorm affine: one FMA per element.
        scale = gamma * lax.rsqrt(var + BN_EPS)
        shift = beta - mean * scale

        h = _leaky_relu(out * scale + shift)                       # f32
        out = h + (jnp.dot(h.astype(mm_dtype), w_ref[blk],
                           preferred_element_type=jnp.float32) + bias)

    out = _leaky_relu(out)
    y = jnp.dot(out.astype(mm_dtype), wf_ref[...],
                preferred_element_type=jnp.float32) + bf_ref[...]
    o_ref[...] = y.astype(o_ref.dtype)


def msblock_forward(x, params, *, mm_dtype=jnp.bfloat16):
    """MSBlock forward.  mm_dtype affects matmul operands only (f32 accum)."""
    B = x.shape[0]
    xf = x.reshape(B, -1).astype(jnp.float32)        # x.view(B, -1)
    H = xf.shape[1]
    O = params["wf"].shape[1]

    Bp = _round_up(max(B, 8), 8)     # sublane-aligned batch
    Hp = _round_up(H, 128)           # lane-aligned hidden size
    Op = _round_up(O, 128)           # lane-dense output (unmasked stores)

    def pad2(a, r, c):
        return jnp.pad(a, ((0, r - a.shape[0]), (0, c - a.shape[1])))

    x_p = pad2(xf, Bp, Hp)

    # Pack the ten small vectors into one array (fewer DMAs / buffers).
    vecs = jnp.concatenate(
        [params[k].reshape(1, H) for k in
         ("g1", "be1", "b1", "g2", "be2", "b2", "g3", "be3", "b3")], axis=0)
    vecs_p = pad2(vecs, 9, Hp)                                       # f32

    # Pack the three residual weights into one array; store in matmul dtype.
    w = jnp.stack([params["w1"], params["w2"], params["w3"]], axis=0)
    w_p = jnp.pad(w, ((0, 0), (0, Hp - H), (0, Hp - H))).astype(mm_dtype)

    wf_p = pad2(params["wf"], Hp, Op).astype(mm_dtype)
    bf_p = pad2(params["bf"].reshape(1, O), 1, Op)                   # f32

    args = (x_p, vecs_p, w_p, wf_p, bf_p)

    flops = 2 * Bp * Hp * (3 * Hp + Op) + 20 * Bp * Hp
    bytes_accessed = (sum(int(a.size) * a.dtype.itemsize for a in args)
                      + Bp * Op * 4)
    cost = pl.CostEstimate(flops=int(flops),
                           transcendentals=int(3 * Hp),
                           bytes_accessed=int(bytes_accessed))

    vmem = pl.BlockSpec(memory_space=pltpu.MemorySpace.VMEM)
    kernel = functools.partial(_msblock_kernel, n_valid=B, mm_dtype=mm_dtype)

    y_p = pl.pallas_call(
        kernel,
        out_shape=jax.ShapeDtypeStruct((Bp, Op), jnp.float32),
        in_specs=[vmem] * len(args),
        out_specs=vmem,
        cost_estimate=cost,
        compiler_params=pltpu.CompilerParams(
            vmem_limit_bytes=32 * 1024 * 1024),
    )(*args)

    return y_p[:B, :O]


def init_params(key, hidden_size, out_size):
    # Deterministic synthetic parameters mirroring PyTorch default inits:
    # BN: weight=1, bias=0; Linear: U(-1/sqrt(fan_in), 1/sqrt(fan_in)).
    # Linear weights are stored pre-transposed to (in, out).
    keys = jax.random.split(key, 8)

    def lin(kw, kb, fan_in, fan_out):
        bound = 1.0 / float(fan_in) ** 0.5
        w = jax.random.uniform(kw, (fan_in, fan_out), jnp.float32, -bound, bound)
        b = jax.random.uniform(kb, (1, fan_out), jnp.float32, -bound, bound)
        return w, b

    w1, b1 = lin(keys[0], keys[1], hidden_size, hidden_size)
    w2, b2 = lin(keys[2], keys[3], hidden_size, hidden_size)
    w3, b3 = lin(keys[4], keys[5], hidden_size, hidden_size)
    wf, bf = lin(keys[6], keys[7], hidden_size, out_size)

    ones = jnp.ones((1, hidden_size), jnp.float32)
    zeros = jnp.zeros((1, hidden_size), jnp.float32)
    return dict(
        g1=ones, be1=zeros, w1=w1, b1=b1,
        g2=ones, be2=zeros, w2=w2, b2=b2,
        g3=ones, be3=zeros, w3=w3, b3=b3,
        wf=wf, bf=bf,
    )


def msblock_reference(x, params, *, mm_dtype=jnp.float32):
    """Pure-JAX reference of the PyTorch forward (training-mode BatchNorm)."""
    xf = x.reshape(x.shape[0], -1).astype(jnp.float32)

    def res(h, g, be, w, b):
        mean = jnp.mean(h, axis=0, keepdims=True)
        var = jnp.mean((h - mean) ** 2, axis=0, keepdims=True)
        out = (h - mean) / jnp.sqrt(var + BN_EPS) * g + be
        out = jnp.where(out >= 0, out, LEAKY_SLOPE * out)
        lin = jnp.dot(out.astype(mm_dtype), w.astype(mm_dtype),
                      preferred_element_type=jnp.float32) + b
        return out + lin

    out = res(xf, params["g1"], params["be1"], params["w1"], params["b1"])
    out = res(out, params["g2"], params["be2"], params["w2"], params["b2"])
    out = res(out, params["g3"], params["be3"], params["w3"], params["b3"])
    out = jnp.where(out >= 0, out, LEAKY_SLOPE * out)
    return jnp.dot(out.astype(mm_dtype), params["wf"].astype(mm_dtype),
                   preferred_element_type=jnp.float32) + params["bf"]


if __name__ == "__main__":
    # Small but MXU-friendlier shapes: x.view(B, -1) -> (64, 128).
    B, C, S = 64, 4, 32
    hidden_size = C * S          # 128 (lane-aligned)
    out_size = 64                # padded to 128 lanes inside the wrapper

    key = jax.random.PRNGKey(0)
    kx, kp = jax.random.split(key)
    x = jax.random.normal(kx, (B, C, S), jnp.float32)
    params = init_params(kp, hidden_size, out_size)

    y = msblock_forward(x, params, mm_dtype=jnp.bfloat16)
    jax.block_until_ready(y)
    assert y.shape == (B, out_size)

    # Matched-precision reference (same bf16 matmul operands, f32 accumulation).
    y_ref_bf16 = msblock_reference(x, params, mm_dtype=jnp.bfloat16)
    assert jnp.allclose(y, y_ref_bf16, atol=1e-2, rtol=1e-2), float(
        jnp.max(jnp.abs(y - y_ref_bf16)))

    # Loose sanity check against the full-f32 PyTorch-semantics reference
    # (bf16 matmul operands change results at the ~1e-2 level).
    y_ref_f32 = msblock_reference(x, params, mm_dtype=jnp.float32)
    assert jnp.allclose(y, y_ref_f32, atol=1e-1, rtol=1e-1), float(
        jnp.max(jnp.abs(y - y_ref_f32)))

    print("KERNEL_OK")
</pallas_src>

<mosaic_0001>
module attributes {stable_mosaic.version = 11 : i64} {
  func.func @_msblock_kernel(%arg0: memref<64x128xf32, #tpu.memory_space<vmem>>, %arg1: memref<9x128xf32, #tpu.memory_space<vmem>>, %arg2: memref<3x128x128xbf16, #tpu.memory_space<vmem>>, %arg3: memref<128x128xbf16, #tpu.memory_space<vmem>>, %arg4: memref<1x128xf32, #tpu.memory_space<vmem>>, %arg5: memref<64x128xf32, #tpu.memory_space<vmem>>) attributes {dimension_semantics = [], scalar_prefetch = 0 : i64, scratch_operands = 0 : i64, tpu.core_type = #tpu.core_type<tc>} {
    %c0 = arith.constant 0 : index
    %c0_0 = arith.constant 0 : index
    %0 = vector.load %arg0[%c0, %c0_0] : memref<64x128xf32, #tpu.memory_space<vmem>>, vector<64x128xf32>
    %c0_1 = arith.constant 0 : index
    %c0_2 = arith.constant 0 : index
    %1 = vector.load %arg1[%c0_1, %c0_2] : memref<9x128xf32, #tpu.memory_space<vmem>>, vector<1x128xf32>
    %c1 = arith.constant 1 : index
    %c0_3 = arith.constant 0 : index
    %2 = vector.load %arg1[%c1, %c0_3] : memref<9x128xf32, #tpu.memory_space<vmem>>, vector<1x128xf32>
    %c2 = arith.constant 2 : index
    %c0_4 = arith.constant 0 : index
    %3 = vector.load %arg1[%c2, %c0_4] : memref<9x128xf32, #tpu.memory_space<vmem>>, vector<1x128xf32>
    %cst = arith.constant dense<0.000000e+00> : vector<128xf32>
    %4 = vector.multi_reduction <add>, %0, %cst [0] : vector<64x128xf32> to vector<128xf32>
    %5 = vector.shape_cast %4 : vector<128xf32> to vector<1x128xf32>
    %6 = arith.mulf %0, %0 : vector<64x128xf32>
    %cst_5 = arith.constant dense<0.000000e+00> : vector<128xf32>
    %7 = vector.multi_reduction <add>, %6, %cst_5 [0] : vector<64x128xf32> to vector<128xf32>
    %8 = vector.shape_cast %7 : vector<128xf32> to vector<1x128xf32>
    %cst_6 = arith.constant 1.562500e-02 : f32
    %9 = vector.broadcast %cst_6 : f32 to vector<1x128xf32>
    %10 = arith.mulf %5, %9 : vector<1x128xf32>
    %cst_7 = arith.constant 1.562500e-02 : f32
    %11 = vector.broadcast %cst_7 : f32 to vector<1x128xf32>
    %12 = arith.mulf %8, %11 : vector<1x128xf32>
    %13 = arith.mulf %10, %10 : vector<1x128xf32>
    %14 = arith.subf %12, %13 : vector<1x128xf32>
    %cst_8 = arith.constant 0.000000e+00 : f32
    %15 = vector.broadcast %cst_8 : f32 to vector<1x128xf32>
    %16 = arith.maximumf %14, %15 : vector<1x128xf32>
    %cst_9 = arith.constant 9.99999974E-6 : f32
    %17 = vector.broadcast %cst_9 : f32 to vector<1x128xf32>
    %18 = arith.addf %16, %17 : vector<1x128xf32>
    %19 = math.rsqrt %18 : vector<1x128xf32>
    %20 = arith.mulf %1, %19 : vector<1x128xf32>
    %21 = arith.mulf %10, %20 : vector<1x128xf32>
    %22 = arith.subf %2, %21 : vector<1x128xf32>
    %23 = vector.broadcast %20 : vector<1x128xf32> to vector<64x128xf32>
    %24 = arith.mulf %0, %23 : vector<64x128xf32>
    %25 = vector.broadcast %22 : vector<1x128xf32> to vector<64x128xf32>
    %26 = arith.addf %24, %25 : vector<64x128xf32>
    %cst_10 = arith.constant 5.000000e-01 : f32
    %27 = vector.broadcast %cst_10 : f32 to vector<64x128xf32>
    %28 = arith.mulf %27, %26 : vector<64x128xf32>
    %29 = arith.maximumf %26, %28 : vector<64x128xf32>
    %30 = arith.truncf %29 : vector<64x128xf32> to vector<64x128xbf16>
    %c0_11 = arith.constant 0 : index
    %c0_12 = arith.constant 0 : index
    %c0_13 = arith.constant 0 : index
    %31 = vector.load %arg2[%c0_11, %c0_12, %c0_13] : memref<3x128x128xbf16, #tpu.memory_space<vmem>>, vector<1x128x128xbf16>
    %32 = vector.shape_cast %31 : vector<1x128x128xbf16> to vector<128x128xbf16>
    %cst_14 = arith.constant dense<0.000000e+00> : vector<64x128xf32>
    %33 = tpu.matmul %30, %32, %cst_14 {dimension_numbers = #tpu.dot_dimension_numbers<[1], [0], [0], [1], [0, 0, 1, 1], [], []>} : vector<64x128xbf16>, vector<128x128xbf16>, vector<64x128xf32> -> vector<64x128xf32>
    %34 = vector.broadcast %3 : vector<1x128xf32> to vector<64x128xf32>
    %35 = arith.addf %33, %34 : vector<64x128xf32>
    %36 = arith.addf %29, %35 : vector<64x128xf32>
    %c3 = arith.constant 3 : index
    %c0_15 = arith.constant 0 : index
    %37 = vector.load %arg1[%c3, %c0_15] : memref<9x128xf32, #tpu.memory_space<vmem>>, vector<1x128xf32>
    %c4 = arith.constant 4 : index
    %c0_16 = arith.constant 0 : index
    %38 = vector.load %arg1[%c4, %c0_16] : memref<9x128xf32, #tpu.memory_space<vmem>>, vector<1x128xf32>
    %c5 = arith.constant 5 : index
    %c0_17 = arith.constant 0 : index
    %39 = vector.load %arg1[%c5, %c0_17] : memref<9x128xf32, #tpu.memory_space<vmem>>, vector<1x128xf32>
    %cst_18 = arith.constant dense<0.000000e+00> : vector<128xf32>
    %40 = vector.multi_reduction <add>, %36, %cst_18 [0] : vector<64x128xf32> to vector<128xf32>
    %41 = vector.shape_cast %40 : vector<128xf32> to vector<1x128xf32>
    %42 = arith.mulf %36, %36 : vector<64x128xf32>
    %cst_19 = arith.constant dense<0.000000e+00> : vector<128xf32>
    %43 = vector.multi_reduction <add>, %42, %cst_19 [0] : vector<64x128xf32> to vector<128xf32>
    %44 = vector.shape_cast %43 : vector<128xf32> to vector<1x128xf32>
    %cst_20 = arith.constant 1.562500e-02 : f32
    %45 = vector.broadcast %cst_20 : f32 to vector<1x128xf32>
    %46 = arith.mulf %41, %45 : vector<1x128xf32>
    %cst_21 = arith.constant 1.562500e-02 : f32
    %47 = vector.broadcast %cst_21 : f32 to vector<1x128xf32>
    %48 = arith.mulf %44, %47 : vector<1x128xf32>
    %49 = arith.mulf %46, %46 : vector<1x128xf32>
    %50 = arith.subf %48, %49 : vector<1x128xf32>
    %cst_22 = arith.constant 0.000000e+00 : f32
    %51 = vector.broadcast %cst_22 : f32 to vector<1x128xf32>
    %52 = arith.maximumf %50, %51 : vector<1x128xf32>
    %cst_23 = arith.constant 9.99999974E-6 : f32
    %53 = vector.broadcast %cst_23 : f32 to vector<1x128xf32>
    %54 = arith.addf %52, %53 : vector<1x128xf32>
    %55 = math.rsqrt %54 : vector<1x128xf32>
    %56 = arith.mulf %37, %55 : vector<1x128xf32>
    %57 = arith.mulf %46, %56 : vector<1x128xf32>
    %58 = arith.subf %38, %57 : vector<1x128xf32>
    %59 = vector.broadcast %56 : vector<1x128xf32> to vector<64x128xf32>
    %60 = arith.mulf %36, %59 : vector<64x128xf32>
    %61 = vector.broadcast %58 : vector<1x128xf32> to vector<64x128xf32>
    %62 = arith.addf %60, %61 : vector<64x128xf32>
    %cst_24 = arith.constant 5.000000e-01 : f32
    %63 = vector.broadcast %cst_24 : f32 to vector<64x128xf32>
    %64 = arith.mulf %63, %62 : vector<64x128xf32>
    %65 = arith.maximumf %62, %64 : vector<64x128xf32>
    %66 = arith.truncf %65 : vector<64x128xf32> to vector<64x128xbf16>
    %c1_25 = arith.constant 1 : index
    %c0_26 = arith.constant 0 : index
    %c0_27 = arith.constant 0 : index
    %67 = vector.load %arg2[%c1_25, %c0_26, %c0_27] : memref<3x128x128xbf16, #tpu.memory_space<vmem>>, vector<1x128x128xbf16>
    %68 = vector.shape_cast %67 : vector<1x128x128xbf16> to vector<128x128xbf16>
    %cst_28 = arith.constant dense<0.000000e+00> : vector<64x128xf32>
    %69 = tpu.matmul %66, %68, %cst_28 {dimension_numbers = #tpu.dot_dimension_numbers<[1], [0], [0], [1], [0, 0, 1, 1], [], []>} : vector<64x128xbf16>, vector<128x128xbf16>, vector<64x128xf32> -> vector<64x128xf32>
    %70 = vector.broadcast %39 : vector<1x128xf32> to vector<64x128xf32>
    %71 = arith.addf %69, %70 : vector<64x128xf32>
    %72 = arith.addf %65, %71 : vector<64x128xf32>
    %c6 = arith.constant 6 : index
    %c0_29 = arith.constant 0 : index
    %73 = vector.load %arg1[%c6, %c0_29] : memref<9x128xf32, #tpu.memory_space<vmem>>, vector<1x128xf32>
    %c7 = arith.constant 7 : index
    %c0_30 = arith.constant 0 : index
    %74 = vector.load %arg1[%c7, %c0_30] : memref<9x128xf32, #tpu.memory_space<vmem>>, vector<1x128xf32>
    %c8 = arith.constant 8 : index
    %c0_31 = arith.constant 0 : index
    %75 = vector.load %arg1[%c8, %c0_31] : memref<9x128xf32, #tpu.memory_space<vmem>>, vector<1x128xf32>
    %cst_32 = arith.constant dense<0.000000e+00> : vector<128xf32>
    %76 = vector.multi_reduction <add>, %72, %cst_32 [0] : vector<64x128xf32> to vector<128xf32>
    %77 = vector.shape_cast %76 : vector<128xf32> to vector<1x128xf32>
    %78 = arith.mulf %72, %72 : vector<64x128xf32>
    %cst_33 = arith.constant dense<0.000000e+00> : vector<128xf32>
    %79 = vector.multi_reduction <add>, %78, %cst_33 [0] : vector<64x128xf32> to vector<128xf32>
    %80 = vector.shape_cast %79 : vector<128xf32> to vector<1x128xf32>
    %cst_34 = arith.constant 1.562500e-02 : f32
    %81 = vector.broadcast %cst_34 : f32 to vector<1x128xf32>
    %82 = arith.mulf %77, %81 : vector<1x128xf32>
    %cst_35 = arith.constant 1.562500e-02 : f32
    %83 = vector.broadcast %cst_35 : f32 to vector<1x128xf32>
    %84 = arith.mulf %80, %83 : vector<1x128xf32>
    %85 = arith.mulf %82, %82 : vector<1x128xf32>
    %86 = arith.subf %84, %85 : vector<1x128xf32>
    %cst_36 = arith.constant 0.000000e+00 : f32
    %87 = vector.broadcast %cst_36 : f32 to vector<1x128xf32>
    %88 = arith.maximumf %86, %87 : vector<1x128xf32>
    %cst_37 = arith.constant 9.99999974E-6 : f32
    %89 = vector.broadcast %cst_37 : f32 to vector<1x128xf32>
    %90 = arith.addf %88, %89 : vector<1x128xf32>
    %91 = math.rsqrt %90 : vector<1x128xf32>
    %92 = arith.mulf %73, %91 : vector<1x128xf32>
    %93 = arith.mulf %82, %92 : vector<1x128xf32>
    %94 = arith.subf %74, %93 : vector<1x128xf32>
    %95 = vector.broadcast %92 : vector<1x128xf32> to vector<64x128xf32>
    %96 = arith.mulf %72, %95 : vector<64x128xf32>
    %97 = vector.broadcast %94 : vector<1x128xf32> to vector<64x128xf32>
    %98 = arith.addf %96, %97 : vector<64x128xf32>
    %cst_38 = arith.constant 5.000000e-01 : f32
    %99 = vector.broadcast %cst_38 : f32 to vector<64x128xf32>
    %100 = arith.mulf %99, %98 : vector<64x128xf32>
    %101 = arith.maximumf %98, %100 : vector<64x128xf32>
    %102 = arith.truncf %101 : vector<64x128xf32> to vector<64x128xbf16>
    %c2_39 = arith.constant 2 : index
    %c0_40 = arith.constant 0 : index
    %c0_41 = arith.constant 0 : index
    %103 = vector.load %arg2[%c2_39, %c0_40, %c0_41] : memref<3x128x128xbf16, #tpu.memory_space<vmem>>, vector<1x128x128xbf16>
    %104 = vector.shape_cast %103 : vector<1x128x128xbf16> to vector<128x128xbf16>
    %cst_42 = arith.constant dense<0.000000e+00> : vector<64x128xf32>
    %105 = tpu.matmul %102, %104, %cst_42 {dimension_numbers = #tpu.dot_dimension_numbers<[1], [0], [0], [1], [0, 0, 1, 1], [], []>} : vector<64x128xbf16>, vector<128x128xbf16>, vector<64x128xf32> -> vector<64x128xf32>
    %106 = vector.broadcast %75 : vector<1x128xf32> to vector<64x128xf32>
    %107 = arith.addf %105, %106 : vector<64x128xf32>
    %108 = arith.addf %101, %107 : vector<64x128xf32>
    %cst_43 = arith.constant 5.000000e-01 : f32
    %109 = vector.broadcast %cst_43 : f32 to vector<64x128xf32>
    %110 = arith.mulf %109, %108 : vector<64x128xf32>
    %111 = arith.maximumf %108, %110 : vector<64x128xf32>
    %112 = arith.truncf %111 : vector<64x128xf32> to vector<64x128xbf16>
    %c0_44 = arith.constant 0 : index
    %c0_45 = arith.constant 0 : index
    %113 = vector.load %arg3[%c0_44, %c0_45] : memref<128x128xbf16, #tpu.memory_space<vmem>>, vector<128x128xbf16>
    %cst_46 = arith.constant dense<0.000000e+00> : vector<64x128xf32>
    %114 = tpu.matmul %112, %113, %cst_46 {dimension_numbers = #tpu.dot_dimension_numbers<[1], [0], [0], [1], [0, 0, 1, 1], [], []>} : vector<64x128xbf16>, vector<128x128xbf16>, vector<64x128xf32> -> vector<64x128xf32>
    %c0_47 = arith.constant 0 : index
    %c0_48 = arith.constant 0 : index
    %115 = vector.load %arg4[%c0_47, %c0_48] : memref<1x128xf32, #tpu.memory_space<vmem>>, vector<1x128xf32>
    %116 = vector.broadcast %115 : vector<1x128xf32> to vector<64x128xf32>
    %117 = arith.addf %114, %116 : vector<64x128xf32>
    %c0_49 = arith.constant 0 : index
    %c0_50 = arith.constant 0 : index
    %118 = vector.load %arg5[%c0_49, %c0_50] : memref<64x128xf32, #tpu.memory_space<vmem>>, vector<64x128xf32>
    tpu.vector_store %arg5[%c0_49, %c0_50], %117 {strides = array<i32>} : memref<64x128xf32, #tpu.memory_space<vmem>>, vector<64x128xf32>,
    return
  }
}

</mosaic_0001>

<llo_original>
// kernel: tpu_custom_call.1
$region0: #{tpu_custom_call.1}
  #allocation0 [shape = 'u32[]', space=smem, size = 0x4, offset = 0x4, fixed_abs, tag = 'smem constant byte address 0x4 - core index']
  #allocation1 [shape = 'u32[144,128]{1,0:T(1,128)}', space=vmem, size = 0x12000, scoped, tag = 'internal scratch']
  %s0 = inlined_call_operand.hbm [shape: f32[64,128], index: 0, kind: input, shape index: {}]
  %s1 = inlined_call_operand.hbm [shape: f32[9,128], index: 1, kind: input, shape index: {}]
  %s2 = inlined_call_operand.hbm [shape: bf16[3,128,128], index: 2, kind: input, shape index: {}]
  %s3 = inlined_call_operand.hbm [shape: bf16[128,128], index: 3, kind: input, shape index: {}]
  %s4 = inlined_call_operand.vmem [shape: f32[1,128], index: 4, kind: input, shape index: {}]
  %s5 = inlined_call_operand.hbm [shape: f32[64,128], index: 5, kind: output, shape index: {}]
  %s6 = sld [smem:[#allocation0]]
  $region46: #{tpu_custom_call.1} parent=0
    _
  %s8 = ssub.s32 1, %s6
  %s9 = scalar_select 0, %s8, %s6
  $region1: #{tpu_custom_call.1} parent=0
    #allocation2 [shape = 'u8[32768]{0}', space=vmem, size = 0x8000, scoped, tag = 'input window, operand 0, single buffered']
    #allocation3 [shape = 's32[1]{0}', space=sflag, size = 0x4, scoped, tag = 'scoped memory for tpu_custom_call.1']
    #allocation4 [shape = 's32[1]{0}', space=sflag, size = 0x4, scoped, tag = 'scoped memory for tpu_custom_call.1']
    #allocation5 [shape = 'u8[8192]{0}', space=vmem, size = 0x2000, scoped, tag = 'input window, operand 1, single buffered']
    #allocation6 [shape = 's32[1]{0}', space=sflag, size = 0x4, scoped, tag = 'scoped memory for tpu_custom_call.1']
    #allocation7 [shape = 'u8[98304]{0}', space=vmem, size = 0x18000, scoped, tag = 'input window, operand 2, single buffered']
    #allocation8 [shape = 'u8[32768]{0}', space=vmem, size = 0x8000, scoped, tag = 'input window, operand 3, single buffered']
    #allocation9 [shape = 's32[1]{0}', space=sflag, size = 0x4, scoped, tag = 'scoped memory for tpu_custom_call.1']
    #allocation10 [shape = 'u8[32768]{0}', space=vmem, size = 0x8000, scoped, tag = 'output window, operand 0, single buffered']
    %10 = vsyncpa [#allocation3], 0
    %11 = vsyncpa [#allocation6], 0
    %12 = vsyncpa [#allocation9], 0
    %13 = vsyncpa [#allocation4], 0
    // Predicated region
    $region2: #{tpu_custom_call.1} parent=1 // pred_check
      _
    $region3: #{tpu_custom_call.1} parent=1 // pred_check_branch
      %15 = sbr.rel (0) target = $region5
    $region4: #{tpu_custom_call.1} parent=1 // pred_region
      %s17 = ssub.s32 1024, 1024
      %18 = vsyncadd [#allocation3], %s17
      %s19 = sshll.u32 [#allocation2], 4
      %s20 = int_to_ptr.vmem [resolvable:$true] %s19
      %25 = dma.hbm_to_vmem [thread:$0]  %s0, 1024, %s20, [#allocation3], 128, 128, 8
    $region5: #{tpu_custom_call.1} parent=1 // pred_fallthru
      _
    // Predicated region
    $region6: #{tpu_custom_call.1} parent=1 // pred_check
      _
    $region7: #{tpu_custom_call.1} parent=1 // pred_check_branch
      %27 = sbr.rel (0) target = $region9
    $region8: #{tpu_custom_call.1} parent=1 // pred_region
      %s29 = ssub.s32 256, 256
      %30 = vsyncadd [#allocation6], %s29
      %s31 = sshll.u32 [#allocation5], 4
      %s32 = int_to_ptr.vmem [resolvable:$true] %s31
      %37 = dma.hbm_to_vmem [thread:$0]  %s1, 256, %s32, [#allocation6], 128, 128, 8
    $region9: #{tpu_custom_call.1} parent=1 // pred_fallthru
      _
    // Predicated region
    $region10: #{tpu_custom_call.1} parent=1 // pred_check
      _
    $region11: #{tpu_custom_call.1} parent=1 // pred_check_branch
      %39 = sbr.rel (0) target = $region13
    $region12: #{tpu_custom_call.1} parent=1 // pred_region
      %s41 = ssub.s32 3072, 3072
      %42 = vsyncadd [#allocation6], %s41
      %s43 = sshll.u32 [#allocation7], 4
      %s44 = int_to_ptr.vmem [resolvable:$true] %s43
      %49 = dma.hbm_to_vmem [thread:$0]  %s2, 3072, %s44, [#allocation6], 64, 64, 4
    $region13: #{tpu_custom_call.1} parent=1 // pred_fallthru
      _
    // Predicated region
    $region14: #{tpu_custom_call.1} parent=1 // pred_check
      _
    $region15: #{tpu_custom_call.1} parent=1 // pred_check_branch
      %51 = sbr.rel (0) target = $region17
    $region16: #{tpu_custom_call.1} parent=1 // pred_region
      %s53 = ssub.s32 1024, 1024
      %54 = vsyncadd [#allocation9], %s53
      %s55 = sshll.u32 [#allocation8], 4
      %s56 = int_to_ptr.vmem [resolvable:$true] %s55
      %61 = dma.hbm_to_vmem [thread:$0]  %s3, 1024, %s56, [#allocation9], 64, 64, 4
    $region17: #{tpu_custom_call.1} parent=1 // pred_fallthru
      _
    // Predicated region
    $region18: #{tpu_custom_call.1} parent=1 // pred_check
      _
    $region19: #{tpu_custom_call.1} parent=1 // pred_check_branch
      %63 = sbr.rel (0) target = $region21
    $region20: #{tpu_custom_call.1} parent=1 // pred_region
      _
    $region21: #{tpu_custom_call.1} parent=1 // pred_fallthru
      _
    // Predicated region
    $region22: #{tpu_custom_call.1} parent=1 // pred_check
      _
    $region23: #{tpu_custom_call.1} parent=1 // pred_check_branch
      %65 = sbr.rel (0) target = $region25
    $region24: #{tpu_custom_call.1} parent=1 // pred_region
      %66 = dma.done [#allocation3], 1024
    $region25: #{tpu_custom_call.1} parent=1 // pred_fallthru
      _
    // Predicated region
    $region26: #{tpu_custom_call.1} parent=1 // pred_check
      _
    $region27: #{tpu_custom_call.1} parent=1 // pred_check_branch
      %68 = sbr.rel (0) target = $region29
    $region28: #{tpu_custom_call.1} parent=1 // pred_region
      %69 = dma.done [#allocation6], 256
    $region29: #{tpu_custom_call.1} parent=1 // pred_fallthru
      _
    // Predicated region
    $region30: #{tpu_custom_call.1} parent=1 // pred_check
      _
    $region31: #{tpu_custom_call.1} parent=1 // pred_check_branch
      %71 = sbr.rel (0) target = $region33
    $region32: #{tpu_custom_call.1} parent=1 // pred_region
      %72 = dma.done [#allocation6], 3072
    $region33: #{tpu_custom_call.1} parent=1 // pred_fallthru
      _
    // Predicated region
    $region34: #{tpu_custom_call.1} parent=1 // pred_check
      _
    $region35: #{tpu_custom_call.1} parent=1 // pred_check_branch
      %74 = sbr.rel (0) target = $region37
    $region36: #{tpu_custom_call.1} parent=1 // pred_region
      %75 = dma.done [#allocation9], 1024
    $region37: #{tpu_custom_call.1} parent=1 // pred_fallthru
      _
    %v77 = vld [vmem:[#allocation2] sm:$0xff]
    %v78 = vld [vmem:[#allocation2 + $0x8] sm:$0xff]
    %v79 = vld [vmem:[#allocation2 + $0x10] sm:$0xff]
    %v80 = vld [vmem:[#allocation2 + $0x18] sm:$0xff]
    %v81 = vld [vmem:[#allocation2 + $0x20] sm:$0xff]
    %v82 = vld [vmem:[#allocation2 + $0x28] sm:$0xff]
    %v83 = vld [vmem:[#allocation2 + $0x30] sm:$0xff]
    %v84 = vld [vmem:[#allocation2 + $0x38] sm:$0xff]
    %v85 = vld [vmem:[#allocation5] sm:$0x1]
    %v86 = vld [vmem:[#allocation5 + $0x1] sm:$0x1]
    %v87 = vld [vmem:[#allocation5 + $0x2] sm:$0x1]
    %v88 = vadd.f32 %v77, %v78
    %v89 = vadd.f32 %v88, %v79
    %v90 = vadd.f32 %v89, %v80
    %v91 = vadd.f32 %v90, %v81
    %v92 = vadd.f32 %v91, %v82
    %v93 = vadd.f32 %v92, %v83
    %v94 = vadd.f32 %v93, %v84
    %v95 = vrot.slane %v94, 4
    %v96 = vadd.f32 %v94, %v95
    %v97 = vrot.slane %v96, 2
    %v98 = vadd.f32 %v96, %v97
    %v99 = vrot.slane %v98, 1
    %v100 = vadd.f32 %v98, %v99
    %v101 = vmul.f32 %v77, %v77
    %v102 = vmul.f32 %v78, %v78
    %v103 = vmul.f32 %v79, %v79
    %v104 = vmul.f32 %v80, %v80
    %v105 = vmul.f32 %v81, %v81
    %v106 = vmul.f32 %v82, %v82
    %v107 = vmul.f32 %v83, %v83
    %v108 = vmul.f32 %v84, %v84
    %v109 = vadd.f32 %v101, %v102
    %v110 = vadd.f32 %v109, %v103
    %v111 = vadd.f32 %v110, %v104
    %v112 = vadd.f32 %v111, %v105
    %v113 = vadd.f32 %v112, %v106
    %v114 = vadd.f32 %v113, %v107
    %v115 = vadd.f32 %v114, %v108
    %v116 = vrot.slane %v115, 4
    %v117 = vadd.f32 %v115, %v116
    %v118 = vrot.slane %v117, 2
    %v119 = vadd.f32 %v117, %v118
    %v120 = vrot.slane %v119, 1
    %v121 = vadd.f32 %v119, %v120
    %v122 = vmul.f32 %v100, 0.015625
    %v123 = vmul.f32 %v121, 0.015625
    %v124 = vmul.f32 %v122, %v122
    %v125 = vsub.f32 %v123, %v124
    %v126 = vmax.f32 %v125, 0.0
    %v127 = vadd.f32 %v126, 1e-05
    %v128 = vrsqrt.pop %v127
    %v129 = vmul.f32 %v85, %v128
    %v130 = vmul.f32 %v122, %v129
    %v131 = vsub.f32 %v86, %v130
    %v132 = vlaneseq
    %v133 = vshrl.u32 %v132, 7
    %v134 = vsub.s32 0, %v133
    %v135 = vrot.slane %v129, %v134
    %v136 = vmul.f32 %v77, %v135
    %v137 = vmul.f32 %v78, %v135
    %v138 = vmul.f32 %v79, %v135
    %v139 = vmul.f32 %v80, %v135
    %v140 = vmul.f32 %v81, %v135
    %v141 = vmul.f32 %v82, %v135
    %v142 = vmul.f32 %v83, %v135
    %v143 = vmul.f32 %v84, %v135
    %v144 = vlaneseq
    %v145 = vshrl.u32 %v144, 7
    %v146 = vsub.s32 0, %v145
    %v147 = vrot.slane %v131, %v146
    %v148 = vadd.f32 %v136, %v147
    %v149 = vadd.f32 %v137, %v147
    %v150 = vadd.f32 %v138, %v147
    %v151 = vadd.f32 %v139, %v147
    %v152 = vadd.f32 %v140, %v147
    %v153 = vadd.f32 %v141, %v147
    %v154 = vadd.f32 %v142, %v147
    %v155 = vadd.f32 %v143, %v147
    %v156 = vmul.f32 %v148, 0.5
    %v157 = vmul.f32 %v149, 0.5
    %v158 = vmul.f32 %v150, 0.5
    %v159 = vmul.f32 %v151, 0.5
    %v160 = vmul.f32 %v152, 0.5
    %v161 = vmul.f32 %v153, 0.5
    %v162 = vmul.f32 %v154, 0.5
    %v163 = vmul.f32 %v155, 0.5
    %v164 = vmax.f32 %v148, %v156
    %v165 = vmax.f32 %v149, %v157
    %v166 = vmax.f32 %v150, %v158
    %v167 = vmax.f32 %v151, %v159
    %v168 = vmax.f32 %v152, %v160
    %v169 = vmax.f32 %v153, %v161
    %v170 = vmax.f32 %v154, %v162
    %v171 = vmax.f32 %v155, %v163
    %v172 = vpack.c.bf16 %v165, %v164
    %v173 = vpack.c.bf16 %v167, %v166
    %v174 = vpack.c.bf16 %v169, %v168
    %v175 = vpack.c.bf16 %v171, %v170
    %v176 = vld [vmem:[#allocation7] sm:$0xf]
    %v177 = vld [vmem:[#allocation7 + $0x4] sm:$0xf]
    %v178 = vld [vmem:[#allocation7 + $0x8] sm:$0xf]
    %v179 = vld [vmem:[#allocation7 + $0xc] sm:$0xf]
    %v180 = vld [vmem:[#allocation7 + $0x10] sm:$0xf]
    %v181 = vld [vmem:[#allocation7 + $0x14] sm:$0xf]
    %v182 = vld [vmem:[#allocation7 + $0x18] sm:$0xf]
    %v183 = vld [vmem:[#allocation7 + $0x1c] sm:$0xf]
    %v184 = vld [vmem:[#allocation7 + $0x20] sm:$0xf]
    %v185 = vld [vmem:[#allocation7 + $0x24] sm:$0xf]
    %v186 = vld [vmem:[#allocation7 + $0x28] sm:$0xf]
    %v187 = vld [vmem:[#allocation7 + $0x2c] sm:$0xf]
    %v188 = vld [vmem:[#allocation7 + $0x30] sm:$0xf]
    %v189 = vld [vmem:[#allocation7 + $0x34] sm:$0xf]
    %v190 = vld [vmem:[#allocation7 + $0x38] sm:$0xf]
    %v191 = vld [vmem:[#allocation7 + $0x3c] sm:$0xf]
    %v192 = vlaneseq
    %v193 = vshrl.u32 %v192, 7
    %v194 = vsub.s32 0, %v193
    %v195 = vrot.slane %v87, %v194
    %v212 = vunpack.c.l.b16 %v176
    %v213 = vunpack.c.l.b16 %v177
    %v214 = vunpack.c.l.b16 %v178
    %v215 = vunpack.c.l.b16 %v179
    %v216 = vunpack.c.l.b16 %v180
    %v217 = vunpack.c.l.b16 %v181
    %v218 = vunpack.c.l.b16 %v182
    %v219 = vunpack.c.l.b16 %v183
    %v220 = vunpack.c.l.b16 %v184
    %v221 = vunpack.c.l.b16 %v185
    %v222 = vunpack.c.l.b16 %v186
    %v223 = vunpack.c.l.b16 %v187
    %v224 = vunpack.c.l.b16 %v188
    %v225 = vunpack.c.l.b16 %v189
    %v226 = vunpack.c.l.b16 %v190
    %v227 = vunpack.c.l.b16 %v191
    %v228 = vpack.c.b16 %v213, %v212
    %v229 = vpack.c.b16 %v215, %v214
    %v230 = vpack.c.b16 %v217, %v216
    %v231 = vpack.c.b16 %v219, %v218
    %v232 = vpack.c.b16 %v221, %v220
    %v233 = vpack.c.b16 %v223, %v222
    %v234 = vpack.c.b16 %v225, %v224
    %v235 = vpack.c.b16 %v227, %v226
    %244 = vmatprep.subr.bf16.mxu0 0
    %245 = vmatpush1.bf16.msra.mxu0 %v228
    %246 = vmatprep.subr.bf16.mxu0 0
    %247 = vmatpush1.bf16.msra.mxu0 %v229
    %248 = vmatprep.subr.bf16.mxu0 0
    %249 = vmatpush1.bf16.msra.mxu0 %v230
    %250 = vmatprep.subr.bf16.mxu0 0
    %251 = vmatpush1.bf16.msra.mxu0 %v231
    %252 = vmatprep.subr.bf16.mxu0 0
    %253 = vmatpush1.bf16.msra.mxu0 %v232
    %254 = vmatprep.subr.bf16.mxu0 0
    %255 = vmatpush1.bf16.msra.mxu0 %v233
    %256 = vmatprep.subr.bf16.mxu0 0
    %257 = vmatpush1.bf16.msra.mxu0 %v234
    %258 = vmatprep.subr.bf16.mxu0 0
    %259 = vmatpush1.bf16.msra.mxu0 %v235
    %260 = vmatprep.subr.bf16.mxu0 0
    %261 = vmatpush1.bf16.msra.mxu0 0
    %262 = vmatprep.subr.bf16.mxu0 0
    %263 = vmatpush1.bf16.msra.mxu0 0
    %264 = vmatprep.subr.bf16.mxu0 0
    %265 = vmatpush1.bf16.msra.mxu0 0
    %266 = vmatprep.subr.bf16.mxu0 0
    %267 = vmatpush1.bf16.msra.mxu0 0
    %268 = vmatprep.subr.bf16.mxu0 0
    %269 = vmatpush1.bf16.msra.mxu0 0
    %270 = vmatprep.subr.bf16.mxu0 0
    %271 = vmatpush1.bf16.msra.mxu0 0
    %272 = vmatprep.subr.bf16.mxu0 0
    %273 = vmatpush1.bf16.msra.mxu0 0
    %274 = vmatprep.subr.bf16.mxu0 0
    %275 = vmatpush1.bf16.msra.mxu0 0
    %276 = vmatprep.mubr.bf16.mxu0 0
    %277 = vmatmul.mubr.bf16.gmra.mrb[0].mxu0 %v172
    %v278 = vpop.f32.mrb[0].mxu0
    %v279 = vadd.f32 %v195, %v278
    %v280 = vpop.f32.mrb[0].mxu0
    %v281 = vpop.f32.mrb[0].mxu0
    %v282 = vadd.f32 %v195, %v281
    %v283 = vpop.f32.mrb[0].mxu0
    %284 = vmatprep.mubr.bf16.mxu0 0
    %285 = vmatmul.mubr.bf16.gmra.mrb[0].mxu0 %v173
    %v286 = vpop.f32.mrb[0].mxu0
    %v287 = vadd.f32 %v195, %v286
    %v288 = vpop.f32.mrb[0].mxu0
    %v289 = vpop.f32.mrb[0].mxu0
    %v290 = vadd.f32 %v195, %v289
    %v291 = vpop.f32.mrb[0].mxu0
    %292 = vmatprep.mubr.bf16.mxu0 0
    %293 = vmatmul.mubr.bf16.gmra.mrb[0].mxu0 %v174
    %v294 = vpop.f32.mrb[0].mxu0
    %v295 = vadd.f32 %v195, %v294
    %v296 = vpop.f32.mrb[0].mxu0
    %v297 = vpop.f32.mrb[0].mxu0
    %v298 = vadd.f32 %v195, %v297
    %v299 = vpop.f32.mrb[0].mxu0
    %300 = vmatprep.mubr.bf16.mxu0 0
    %301 = vmatmul.mubr.bf16.gmra.mrb[0].mxu0 %v175
    %v302 = vpop.f32.mrb[0].mxu0
    %v303 = vadd.f32 %v195, %v302
    %v304 = vpop.f32.mrb[0].mxu0
    %v305 = vpop.f32.mrb[0].mxu0
    %v306 = vadd.f32 %v195, %v305
    %v307 = vpop.f32.mrb[0].mxu0
    %308 = vdwg.mxu0
    %v309 = vadd.f32 %v164, %v279
    %v310 = vadd.f32 %v165, %v282
    %v311 = vadd.f32 %v166, %v287
    %v312 = vadd.f32 %v167, %v290
    %v313 = vadd.f32 %v168, %v295
    %v314 = vadd.f32 %v169, %v298
    %v315 = vadd.f32 %v170, %v303
    %v316 = vadd.f32 %v171, %v306
    %v317 = vld [vmem:[#allocation5 + $0x3] sm:$0x1]
    %v318 = vld [vmem:[#allocation5 + $0x4] sm:$0x1]
    %v319 = vld [vmem:[#allocation5 + $0x5] sm:$0x1]
    %v320 = vadd.f32 %v309, %v310
    %v321 = vadd.f32 %v320, %v311
    %v322 = vadd.f32 %v321, %v312
    %v323 = vadd.f32 %v322, %v313
    %v324 = vadd.f32 %v323, %v314
    %v325 = vadd.f32 %v324, %v315
    %v326 = vadd.f32 %v325, %v316
    %v327 = vrot.slane %v326, 4
    %v328 = vadd.f32 %v326, %v327
    %v329 = vrot.slane %v328, 2
    %v330 = vadd.f32 %v328, %v329
    %v331 = vrot.slane %v330, 1
    %v332 = vadd.f32 %v330, %v331
    %v333 = vmul.f32 %v309, %v309
    %v334 = vmul.f32 %v310, %v310
    %v335 = vmul.f32 %v311, %v311
    %v336 = vmul.f32 %v312, %v312
    %v337 = vmul.f32 %v313, %v313
    %v338 = vmul.f32 %v314, %v314
    %v339 = vmul.f32 %v315, %v315
    %v340 = vmul.f32 %v316, %v316
    %v341 = vadd.f32 %v333, %v334
    %v342 = vadd.f32 %v341, %v335
    %v343 = vadd.f32 %v342, %v336
    %v344 = vadd.f32 %v343, %v337
    %v345 = vadd.f32 %v344, %v338
    %v346 = vadd.f32 %v345, %v339
    %v347 = vadd.f32 %v346, %v340
    %v348 = vrot.slane %v347, 4
    %v349 = vadd.f32 %v347, %v348
    %v350 = vrot.slane %v349, 2
    %v351 = vadd.f32 %v349, %v350
    %v352 = vrot.slane %v351, 1
    %v353 = vadd.f32 %v351, %v352
    %v354 = vmul.f32 %v332, 0.015625
    %v355 = vmul.f32 %v353, 0.015625
    %v356 = vmul.f32 %v354, %v354
    %v357 = vsub.f32 %v355, %v356
    %v358 = vmax.f32 %v357, 0.0
    %v359 = vadd.f32 %v358, 1e-05
    %v360 = vrsqrt.pop %v359
    %v361 = vmul.f32 %v317, %v360
    %v362 = vmul.f32 %v354, %v361
    %v363 = vsub.f32 %v318, %v362
    %v364 = vlaneseq
    %v365 = vshrl.u32 %v364, 7
    %v366 = vsub.s32 0, %v365
    %v367 = vrot.slane %v361, %v366
    %v368 = vmul.f32 %v309, %v367
    %v369 = vmul.f32 %v310, %v367
    %v370 = vmul.f32 %v311, %v367
    %v371 = vmul.f32 %v312, %v367
    %v372 = vmul.f32 %v313, %v367
    %v373 = vmul.f32 %v314, %v367
    %v374 = vmul.f32 %v315, %v367
    %v375 = vmul.f32 %v316, %v367
    %v376 = vlaneseq
    %v377 = vshrl.u32 %v376, 7
    %v378 = vsub.s32 0, %v377
    %v379 = vrot.slane %v363, %v378
    %v380 = vadd.f32 %v368, %v379
    %v381 = vadd.f32 %v369, %v379
    %v382 = vadd.f32 %v370, %v379
    %v383 = vadd.f32 %v371, %v379
    %v384 = vadd.f32 %v372, %v379
    %v385 = vadd.f32 %v373, %v379
    %v386 = vadd.f32 %v374, %v379
    %v387 = vadd.f32 %v375, %v379
    %v388 = vmul.f32 %v380, 0.5
    %v389 = vmul.f32 %v381, 0.5
    %v390 = vmul.f32 %v382, 0.5
    %v391 = vmul.f32 %v383, 0.5
    %v392 = vmul.f32 %v384, 0.5
    %v393 = vmul.f32 %v385, 0.5
    %v394 = vmul.f32 %v386, 0.5
    %v395 = vmul.f32 %v387, 0.5
    %v396 = vmax.f32 %v380, %v388
    %v397 = vmax.f32 %v381, %v389
    %v398 = vmax.f32 %v382, %v390
    %v399 = vmax.f32 %v383, %v391
    %v400 = vmax.f32 %v384, %v392
    %v401 = vmax.f32 %v385, %v393
    %v402 = vmax.f32 %v386, %v394
    %v403 = vmax.f32 %v387, %v395
    %v404 = vpack.c.bf16 %v397, %v396
    %v405 = vpack.c.bf16 %v399, %v398
    %v406 = vpack.c.bf16 %v401, %v400
    %v407 = vpack.c.bf16 %v403, %v402
    %s408 = scalar_lea.vmem [#allocation7], 64
    %v409 = vld [vmem:[%s408] sm:$0xf]
    %v410 = vld [vmem:[%s408 + $0x4] sm:$0xf]
    %v411 = vld [vmem:[%s408 + $0x8] sm:$0xf]
    %v412 = vld [vmem:[%s408 + $0xc] sm:$0xf]
    %v413 = vld [vmem:[%s408 + $0x10] sm:$0xf]
    %v414 = vld [vmem:[%s408 + $0x14] sm:$0xf]
    %v415 = vld [vmem:[%s408 + $0x18] sm:$0xf]
    %v416 = vld [vmem:[%s408 + $0x1c] sm:$0xf]
    %v417 = vld [vmem:[%s408 + $0x20] sm:$0xf]
    %v418 = vld [vmem:[%s408 + $0x24] sm:$0xf]
    %v419 = vld [vmem:[%s408 + $0x28] sm:$0xf]
    %v420 = vld [vmem:[%s408 + $0x2c] sm:$0xf]
    %v421 = vld [vmem:[%s408 + $0x30] sm:$0xf]
    %v422 = vld [vmem:[%s408 + $0x34] sm:$0xf]
    %v423 = vld [vmem:[%s408 + $0x38] sm:$0xf]
    %v424 = vld [vmem:[%s408 + $0x3c] sm:$0xf]
    %v425 = vlaneseq
    %v426 = vshrl.u32 %v425, 7
    %v427 = vsub.s32 0, %v426
    %v428 = vrot.slane %v319, %v427
    %v445 = vunpack.c.l.b16 %v409
    %v446 = vunpack.c.l.b16 %v410
    %v447 = vunpack.c.l.b16 %v411
    %v448 = vunpack.c.l.b16 %v412
    %v449 = vunpack.c.l.b16 %v413
    %v450 = vunpack.c.l.b16 %v414
    %v451 = vunpack.c.l.b16 %v415
    %v452 = vunpack.c.l.b16 %v416
    %v453 = vunpack.c.l.b16 %v417
    %v454 = vunpack.c.l.b16 %v418
    %v455 = vunpack.c.l.b16 %v419
    %v456 = vunpack.c.l.b16 %v420
    %v457 = vunpack.c.l.b16 %v421
    %v458 = vunpack.c.l.b16 %v422
    %v459 = vunpack.c.l.b16 %v423
    %v460 = vunpack.c.l.b16 %v424
    %v461 = vpack.c.b16 %v446, %v445
    %v462 = vpack.c.b16 %v448, %v447
    %v463 = vpack.c.b16 %v450, %v449
    %v464 = vpack.c.b16 %v452, %v451
    %v465 = vpack.c.b16 %v454, %v453
    %v466 = vpack.c.b16 %v456, %v455
    %v467 = vpack.c.b16 %v458, %v457
    %v468 = vpack.c.b16 %v460, %v459
    %477 = vmatprep.subr.bf16.mxu0 0
    %478 = vmatpush1.bf16.msra.mxu0 %v461
    %479 = vmatprep.subr.bf16.mxu0 0
    %480 = vmatpush1.bf16.msra.mxu0 %v462
    %481 = vmatprep.subr.bf16.mxu0 0
    %482 = vmatpush1.bf16.msra.mxu0 %v463
    %483 = vmatprep.subr.bf16.mxu0 0
    %484 = vmatpush1.bf16.msra.mxu0 %v464
    %485 = vmatprep.subr.bf16.mxu0 0
    %486 = vmatpush1.bf16.msra.mxu0 %v465
    %487 = vmatprep.subr.bf16.mxu0 0
    %488 = vmatpush1.bf16.msra.mxu0 %v466
    %489 = vmatprep.subr.bf16.mxu0 0
    %490 = vmatpush1.bf16.msra.mxu0 %v467
    %491 = vmatprep.subr.bf16.mxu0 0
    %492 = vmatpush1.bf16.msra.mxu0 %v468
    %493 = vmatprep.subr.bf16.mxu0 0
    %494 = vmatpush1.bf16.msra.mxu0 0
    %495 = vmatprep.subr.bf16.mxu0 0
    %496 = vmatpush1.bf16.msra.mxu0 0
    %497 = vmatprep.subr.bf16.mxu0 0
    %498 = vmatpush1.bf16.msra.mxu0 0
    %499 = vmatprep.subr.bf16.mxu0 0
    %500 = vmatpush1.bf16.msra.mxu0 0
    %501 = vmatprep.subr.bf16.mxu0 0
    %502 = vmatpush1.bf16.msra.mxu0 0
    %503 = vmatprep.subr.bf16.mxu0 0
    %504 = vmatpush1.bf16.msra.mxu0 0
    %505 = vmatprep.subr.bf16.mxu0 0
    %506 = vmatpush1.bf16.msra.mxu0 0
    %507 = vmatprep.subr.bf16.mxu0 0
    %508 = vmatpush1.bf16.msra.mxu0 0
    %509 = vmatprep.mubr.bf16.mxu0 0
    %510 = vmatmul.mubr.bf16.gmra.mrb[0].mxu0 %v404
    %v511 = vpop.f32.mrb[0].mxu0
    %v512 = vadd.f32 %v428, %v511
    %v513 = vpop.f32.mrb[0].mxu0
    %v514 = vpop.f32.mrb[0].mxu0
    %v515 = vadd.f32 %v428, %v514
    %v516 = vpop.f32.mrb[0].mxu0
    %517 = vmatprep.mubr.bf16.mxu0 0
    %518 = vmatmul.mubr.bf16.gmra.mrb[0].mxu0 %v405
    %v519 = vpop.f32.mrb[0].mxu0
    %v520 = vadd.f32 %v428, %v519
    %v521 = vpop.f32.mrb[0].mxu0
    %v522 = vpop.f32.mrb[0].mxu0
    %v523 = vadd.f32 %v428, %v522
    %v524 = vpop.f32.mrb[0].mxu0
    %525 = vmatprep.mubr.bf16.mxu0 0
    %526 = vmatmul.mubr.bf16.gmra.mrb[0].mxu0 %v406
    %v527 = vpop.f32.mrb[0].mxu0
    %v528 = vadd.f32 %v428, %v527
    %v529 = vpop.f32.mrb[0].mxu0
    %v530 = vpop.f32.mrb[0].mxu0
    %v531 = vadd.f32 %v428, %v530
    %v532 = vpop.f32.mrb[0].mxu0
    %533 = vmatprep.mubr.bf16.mxu0 0
    %534 = vmatmul.mubr.bf16.gmra.mrb[0].mxu0 %v407
    %v535 = vpop.f32.mrb[0].mxu0
    %v536 = vadd.f32 %v428, %v535
    %v537 = vpop.f32.mrb[0].mxu0
    %v538 = vpop.f32.mrb[0].mxu0
    %v539 = vadd.f32 %v428, %v538
    %v540 = vpop.f32.mrb[0].mxu0
    %541 = vdwg.mxu0
    %v542 = vadd.f32 %v396, %v512
    %v543 = vadd.f32 %v397, %v515
    %v544 = vadd.f32 %v398, %v520
    %v545 = vadd.f32 %v399, %v523
    %v546 = vadd.f32 %v400, %v528
    %v547 = vadd.f32 %v401, %v531
    %v548 = vadd.f32 %v402, %v536
    %v549 = vadd.f32 %v403, %v539
    %v550 = vld [vmem:[#allocation5 + $0x6] sm:$0x1]
    %v551 = vld [vmem:[#allocation5 + $0x7] sm:$0x1]
    %v552 = vld [vmem:[#allocation5 + $0x8] sm:$0x1]
    %v553 = vadd.f32 %v542, %v543
    %v554 = vadd.f32 %v553, %v544
    %v555 = vadd.f32 %v554, %v545
    %v556 = vadd.f32 %v555, %v546
    %v557 = vadd.f32 %v556, %v547
    %v558 = vadd.f32 %v557, %v548
    %v559 = vadd.f32 %v558, %v549
    %v560 = vrot.slane %v559, 4
    %v561 = vadd.f32 %v559, %v560
    %v562 = vrot.slane %v561, 2
    %v563 = vadd.f32 %v561, %v562
    %v564 = vrot.slane %v563, 1
    %v565 = vadd.f32 %v563, %v564
    %v566 = vmul.f32 %v542, %v542
    %v567 = vmul.f32 %v543, %v543
    %v568 = vmul.f32 %v544, %v544
    %v569 = vmul.f32 %v545, %v545
    %v570 = vmul.f32 %v546, %v546
    %v571 = vmul.f32 %v547, %v547
    %v572 = vmul.f32 %v548, %v548
    %v573 = vmul.f32 %v549, %v549
    %v574 = vadd.f32 %v566, %v567
    %v575 = vadd.f32 %v574, %v568
    %v576 = vadd.f32 %v575, %v569
    %v577 = vadd.f32 %v576, %v570
    %v578 = vadd.f32 %v577, %v571
    %v579 = vadd.f32 %v578, %v572
    %v580 = vadd.f32 %v579, %v573
    %v581 = vrot.slane %v580, 4
    %v582 = vadd.f32 %v580, %v581
    %v583 = vrot.slane %v582, 2
    %v584 = vadd.f32 %v582, %v583
    %v585 = vrot.slane %v584, 1
    %v586 = vadd.f32 %v584, %v585
    %v587 = vmul.f32 %v565, 0.015625
    %v588 = vmul.f32 %v586, 0.015625
    %v589 = vmul.f32 %v587, %v587
    %v590 = vsub.f32 %v588, %v589
    %v591 = vmax.f32 %v590, 0.0
    %v592 = vadd.f32 %v591, 1e-05
    %v593 = vrsqrt.pop %v592
    %v594 = vmul.f32 %v550, %v593
    %v595 = vmul.f32 %v587, %v594
    %v596 = vsub.f32 %v551, %v595
    %v597 = vlaneseq
    %v598 = vshrl.u32 %v597, 7
    %v599 = vsub.s32 0, %v598
    %v600 = vrot.slane %v594, %v599
    %v601 = vmul.f32 %v542, %v600
    %v602 = vmul.f32 %v543, %v600
    %v603 = vmul.f32 %v544, %v600
    %v604 = vmul.f32 %v545, %v600
    %v605 = vmul.f32 %v546, %v600
    %v606 = vmul.f32 %v547, %v600
    %v607 = vmul.f32 %v548, %v600
    %v608 = vmul.f32 %v549, %v600
    %v609 = vlaneseq
    %v610 = vshrl.u32 %v609, 7
    %v611 = vsub.s32 0, %v610
    %v612 = vrot.slane %v596, %v611
    %v613 = vadd.f32 %v601, %v612
    %v614 = vadd.f32 %v602, %v612
    %v615 = vadd.f32 %v603, %v612
    %v616 = vadd.f32 %v604, %v612
    %v617 = vadd.f32 %v605, %v612
    %v618 = vadd.f32 %v606, %v612
    %v619 = vadd.f32 %v607, %v612
    %v620 = vadd.f32 %v608, %v612
    %v621 = vmul.f32 %v613, 0.5
    %v622 = vmul.f32 %v614, 0.5
    %v623 = vmul.f32 %v615, 0.5
    %v624 = vmul.f32 %v616, 0.5
    %v625 = vmul.f32 %v617, 0.5
    %v626 = vmul.f32 %v618, 0.5
    %v627 = vmul.f32 %v619, 0.5
    %v628 = vmul.f32 %v620, 0.5
    %v629 = vmax.f32 %v613, %v621
    %v630 = vmax.f32 %v614, %v622
    %v631 = vmax.f32 %v615, %v623
    %v632 = vmax.f32 %v616, %v624
    %v633 = vmax.f32 %v617, %v625
    %v634 = vmax.f32 %v618, %v626
    %v635 = vmax.f32 %v619, %v627
    %v636 = vmax.f32 %v620, %v628
    %v637 = vpack.c.bf16 %v630, %v629
    %v638 = vpack.c.bf16 %v632, %v631
    %v639 = vpack.c.bf16 %v634, %v633
    %v640 = vpack.c.bf16 %v636, %v635
    %s641 = scalar_lea.vmem [#allocation7], 128
    %v642 = vld [vmem:[%s641] sm:$0xf]
    %v643 = vld [vmem:[%s641 + $0x4] sm:$0xf]
    %v644 = vld [vmem:[%s641 + $0x8] sm:$0xf]
    %v645 = vld [vmem:[%s641 + $0xc] sm:$0xf]
    %v646 = vld [vmem:[%s641 + $0x10] sm:$0xf]
    %v647 = vld [vmem:[%s641 + $0x14] sm:$0xf]
    %v648 = vld [vmem:[%s641 + $0x18] sm:$0xf]
    %v649 = vld [vmem:[%s641 + $0x1c] sm:$0xf]
    %v650 = vld [vmem:[%s641 + $0x20] sm:$0xf]
    %v651 = vld [vmem:[%s641 + $0x24] sm:$0xf]
    %v652 = vld [vmem:[%s641 + $0x28] sm:$0xf]
    %v653 = vld [vmem:[%s641 + $0x2c] sm:$0xf]
    %v654 = vld [vmem:[%s641 + $0x30] sm:$0xf]
    %v655 = vld [vmem:[%s641 + $0x34] sm:$0xf]
    %v656 = vld [vmem:[%s641 + $0x38] sm:$0xf]
    %v657 = vld [vmem:[%s641 + $0x3c] sm:$0xf]
    %v658 = vlaneseq
    %v659 = vshrl.u32 %v658, 7
    %v660 = vsub.s32 0, %v659
    %v661 = vrot.slane %v552, %v660
    %v678 = vunpack.c.l.b16 %v642
    %v679 = vunpack.c.l.b16 %v643
    %v680 = vunpack.c.l.b16 %v644
    %v681 = vunpack.c.l.b16 %v645
    %v682 = vunpack.c.l.b16 %v646
    %v683 = vunpack.c.l.b16 %v647
    %v684 = vunpack.c.l.b16 %v648
    %v685 = vunpack.c.l.b16 %v649
    %v686 = vunpack.c.l.b16 %v650
    %v687 = vunpack.c.l.b16 %v651
    %v688 = vunpack.c.l.b16 %v652
    %v689 = vunpack.c.l.b16 %v653
    %v690 = vunpack.c.l.b16 %v654
    %v691 = vunpack.c.l.b16 %v655
    %v692 = vunpack.c.l.b16 %v656
    %v693 = vunpack.c.l.b16 %v657
    %v694 = vpack.c.b16 %v679, %v678
    %v695 = vpack.c.b16 %v681, %v680
    %v696 = vpack.c.b16 %v683, %v682
    %v697 = vpack.c.b16 %v685, %v684
    %v698 = vpack.c.b16 %v687, %v686
    %v699 = vpack.c.b16 %v689, %v688
    %v700 = vpack.c.b16 %v691, %v690
    %v701 = vpack.c.b16 %v693, %v692
    %710 = vmatprep.subr.bf16.mxu0 0
    %711 = vmatpush1.bf16.msra.mxu0 %v694
    %712 = vmatprep.subr.bf16.mxu0 0
    %713 = vmatpush1.bf16.msra.mxu0 %v695
    %714 = vmatprep.subr.bf16.mxu0 0
    %715 = vmatpush1.bf16.msra.mxu0 %v696
    %716 = vmatprep.subr.bf16.mxu0 0
    %717 = vmatpush1.bf16.msra.mxu0 %v697
    %718 = vmatprep.subr.bf16.mxu0 0
    %719 = vmatpush1.bf16.msra.mxu0 %v698
    %720 = vmatprep.subr.bf16.mxu0 0
    %721 = vmatpush1.bf16.msra.mxu0 %v699
    %722 = vmatprep.subr.bf16.mxu0 0
    %723 = vmatpush1.bf16.msra.mxu0 %v700
    %724 = vmatprep.subr.bf16.mxu0 0
    %725 = vmatpush1.bf16.msra.mxu0 %v701
    %726 = vmatprep.subr.bf16.mxu0 0
    %727 = vmatpush1.bf16.msra.mxu0 0
    %728 = vmatprep.subr.bf16.mxu0 0
    %729 = vmatpush1.bf16.msra.mxu0 0
    %730 = vmatprep.subr.bf16.mxu0 0
    %731 = vmatpush1.bf16.msra.mxu0 0
    %732 = vmatprep.subr.bf16.mxu0 0
    %733 = vmatpush1.bf16.msra.mxu0 0
    %734 = vmatprep.subr.bf16.mxu0 0
    %735 = vmatpush1.bf16.msra.mxu0 0
    %736 = vmatprep.subr.bf16.mxu0 0
    %737 = vmatpush1.bf16.msra.mxu0 0
    %738 = vmatprep.subr.bf16.mxu0 0
    %739 = vmatpush1.bf16.msra.mxu0 0
    %740 = vmatprep.subr.bf16.mxu0 0
    %741 = vmatpush1.bf16.msra.mxu0 0
    %742 = vmatprep.mubr.bf16.mxu0 0
    %743 = vmatmul.mubr.bf16.gmra.mrb[0].mxu0 %v637
    %v744 = vpop.f32.mrb[0].mxu0
    %v745 = vadd.f32 %v661, %v744
    %v746 = vpop.f32.mrb[0].mxu0
    %v747 = vpop.f32.mrb[0].mxu0
    %v748 = vadd.f32 %v661, %v747
    %v749 = vpop.f32.mrb[0].mxu0
    %750 = vmatprep.mubr.bf16.mxu0 0
    %751 = vmatmul.mubr.bf16.gmra.mrb[0].mxu0 %v638
    %v752 = vpop.f32.mrb[0].mxu0
    %v753 = vadd.f32 %v661, %v752
    %v754 = vpop.f32.mrb[0].mxu0
    %v755 = vpop.f32.mrb[0].mxu0
    %v756 = vadd.f32 %v661, %v755
    %v757 = vpop.f32.mrb[0].mxu0
    %758 = vmatprep.mubr.bf16.mxu0 0
    %759 = vmatmul.mubr.bf16.gmra.mrb[0].mxu0 %v639
    %v760 = vpop.f32.mrb[0].mxu0
    %v761 = vadd.f32 %v661, %v760
    %v762 = vpop.f32.mrb[0].mxu0
    %v763 = vpop.f32.mrb[0].mxu0
    %v764 = vadd.f32 %v661, %v763
    %v765 = vpop.f32.mrb[0].mxu0
    %766 = vmatprep.mubr.bf16.mxu0 0
    %767 = vmatmul.mubr.bf16.gmra.mrb[0].mxu0 %v640
    %v768 = vpop.f32.mrb[0].mxu0
    %v769 = vadd.f32 %v661, %v768
    %v770 = vpop.f32.mrb[0].mxu0
    %v771 = vpop.f32.mrb[0].mxu0
    %v772 = vadd.f32 %v661, %v771
    %v773 = vpop.f32.mrb[0].mxu0
    %774 = vdwg.mxu0
    %v775 = vadd.f32 %v629, %v745
    %v776 = vadd.f32 %v630, %v748
    %v777 = vadd.f32 %v631, %v753
    %v778 = vadd.f32 %v632, %v756
    %v779 = vadd.f32 %v633, %v761
    %v780 = vadd.f32 %v634, %v764
    %v781 = vadd.f32 %v635, %v769
    %v782 = vadd.f32 %v636, %v772
    %v783 = vmul.f32 %v775, 0.5
    %v784 = vmul.f32 %v776, 0.5
    %v785 = vmul.f32 %v777, 0.5
    %v786 = vmul.f32 %v778, 0.5
    %v787 = vmul.f32 %v779, 0.5
    %v788 = vmul.f32 %v780, 0.5
    %v789 = vmul.f32 %v781, 0.5
    %v790 = vmul.f32 %v782, 0.5
    %v791 = vmax.f32 %v775, %v783
    %v792 = vmax.f32 %v776, %v784
    %v793 = vmax.f32 %v777, %v785
    %v794 = vmax.f32 %v778, %v786
    %v795 = vmax.f32 %v779, %v787
    %v796 = vmax.f32 %v780, %v788
    %v797 = vmax.f32 %v781, %v789
    %v798 = vmax.f32 %v782, %v790
    %v799 = vpack.c.bf16 %v792, %v791
    %v800 = vpack.c.bf16 %v794, %v793
    %v801 = vpack.c.bf16 %v796, %v795
    %v802 = vpack.c.bf16 %v798, %v797
    %v803 = vld [vmem:[#allocation8] sm:$0xf]
    %v804 = vld [vmem:[#allocation8 + $0x4] sm:$0xf]
    %v805 = vld [vmem:[#allocation8 + $0x8] sm:$0xf]
    %v806 = vld [vmem:[#allocation8 + $0xc] sm:$0xf]
    %v807 = vld [vmem:[#allocation8 + $0x10] sm:$0xf]
    %v808 = vld [vmem:[#allocation8 + $0x14] sm:$0xf]
    %v809 = vld [vmem:[#allocation8 + $0x18] sm:$0xf]
    %v810 = vld [vmem:[#allocation8 + $0x1c] sm:$0xf]
    %v811 = vld [vmem:[#allocation8 + $0x20] sm:$0xf]
    %v812 = vld [vmem:[#allocation8 + $0x24] sm:$0xf]
    %v813 = vld [vmem:[#allocation8 + $0x28] sm:$0xf]
    %v814 = vld [vmem:[#allocation8 + $0x2c] sm:$0xf]
    %v815 = vld [vmem:[#allocation8 + $0x30] sm:$0xf]
    %v816 = vld [vmem:[#allocation8 + $0x34] sm:$0xf]
    %v817 = vld [vmem:[#allocation8 + $0x38] sm:$0xf]
    %v818 = vld [vmem:[#allocation8 + $0x3c] sm:$0xf]
    %v819 = vld [vmem:[%s4] sm:$0x1]
    %v821 = vlaneseq
    %v822 = vshrl.u32 %v821, 7
    %v823 = vsub.s32 0, %v822
    %v824 = vrot.slane %v819, %v823
    %v842 = vunpack.c.l.b16 %v803
    %v843 = vunpack.c.l.b16 %v804
    %v844 = vunpack.c.l.b16 %v805
    %v845 = vunpack.c.l.b16 %v806
    %v846 = vunpack.c.l.b16 %v807
    %v847 = vunpack.c.l.b16 %v808
    %v848 = vunpack.c.l.b16 %v809
    %v849 = vunpack.c.l.b16 %v810
    %v850 = vunpack.c.l.b16 %v811
    %v851 = vunpack.c.l.b16 %v812
    %v852 = vunpack.c.l.b16 %v813
    %v853 = vunpack.c.l.b16 %v814
    %v854 = vunpack.c.l.b16 %v815
    %v855 = vunpack.c.l.b16 %v816
    %v856 = vunpack.c.l.b16 %v817
    %v857 = vunpack.c.l.b16 %v818
    %v858 = vpack.c.b16 %v843, %v842
    %v859 = vpack.c.b16 %v845, %v844
    %v860 = vpack.c.b16 %v847, %v846
    %v861 = vpack.c.b16 %v849, %v848
    %v862 = vpack.c.b16 %v851, %v850
    %v863 = vpack.c.b16 %v853, %v852
    %v864 = vpack.c.b16 %v855, %v854
    %v865 = vpack.c.b16 %v857, %v856
    %874 = vmatprep.subr.bf16.mxu0 0
    %875 = vmatpush1.bf16.msra.mxu0 %v858
    %876 = vmatprep.subr.bf16.mxu0 0
    %877 = vmatpush1.bf16.msra.mxu0 %v859
    %878 = vmatprep.subr.bf16.mxu0 0
    %879 = vmatpush1.bf16.msra.mxu0 %v860
    %880 = vmatprep.subr.bf16.mxu0 0
    %881 = vmatpush1.bf16.msra.mxu0 %v861
    %882 = vmatprep.subr.bf16.mxu0 0
    %883 = vmatpush1.bf16.msra.mxu0 %v862
    %884 = vmatprep.subr.bf16.mxu0 0
    %885 = vmatpush1.bf16.msra.mxu0 %v863
    %886 = vmatprep.subr.bf16.mxu0 0
    %887 = vmatpush1.bf16.msra.mxu0 %v864
    %888 = vmatprep.subr.bf16.mxu0 0
    %889 = vmatpush1.bf16.msra.mxu0 %v865
    %890 = vmatprep.subr.bf16.mxu0 0
    %891 = vmatpush1.bf16.msra.mxu0 0
    %892 = vmatprep.subr.bf16.mxu0 0
    %893 = vmatpush1.bf16.msra.mxu0 0
    %894 = vmatprep.subr.bf16.mxu0 0
    %895 = vmatpush1.bf16.msra.mxu0 0
    %896 = vmatprep.subr.bf16.mxu0 0
    %897 = vmatpush1.bf16.msra.mxu0 0
    %898 = vmatprep.subr.bf16.mxu0 0
    %899 = vmatpush1.bf16.msra.mxu0 0
    %900 = vmatprep.subr.bf16.mxu0 0
    %901 = vmatpush1.bf16.msra.mxu0 0
    %902 = vmatprep.subr.bf16.mxu0 0
    %903 = vmatpush1.bf16.msra.mxu0 0
    %904 = vmatprep.subr.bf16.mxu0 0
    %905 = vmatpush1.bf16.msra.mxu0 0
    %906 = vmatprep.mubr.bf16.mxu0 0
    %907 = vmatmul.mubr.bf16.gmra.mrb[0].mxu0 %v799
    %v908 = vpop.f32.mrb[0].mxu0
    %v909 = vadd.f32 %v824, %v908
    %v910 = vpop.f32.mrb[0].mxu0
    %v911 = vpop.f32.mrb[0].mxu0
    %v912 = vadd.f32 %v824, %v911
    %v913 = vpop.f32.mrb[0].mxu0
    %914 = vmatprep.mubr.bf16.mxu0 0
    %915 = vmatmul.mubr.bf16.gmra.mrb[0].mxu0 %v800
    %v916 = vpop.f32.mrb[0].mxu0
    %v917 = vadd.f32 %v824, %v916
    %v918 = vpop.f32.mrb[0].mxu0
    %v919 = vpop.f32.mrb[0].mxu0
    %v920 = vadd.f32 %v824, %v919
    %v921 = vpop.f32.mrb[0].mxu0
    %922 = vmatprep.mubr.bf16.mxu0 0
    %923 = vmatmul.mubr.bf16.gmra.mrb[0].mxu0 %v801
    %v924 = vpop.f32.mrb[0].mxu0
    %v925 = vadd.f32 %v824, %v924
    %v926 = vpop.f32.mrb[0].mxu0
    %v927 = vpop.f32.mrb[0].mxu0
    %v928 = vadd.f32 %v824, %v927
    %v929 = vpop.f32.mrb[0].mxu0
    %930 = vmatprep.mubr.bf16.mxu0 0
    %931 = vmatmul.mubr.bf16.gmra.mrb[0].mxu0 %v802
    %v932 = vpop.f32.mrb[0].mxu0
    %v933 = vadd.f32 %v824, %v932
    %v934 = vpop.f32.mrb[0].mxu0
    %v935 = vpop.f32.mrb[0].mxu0
    %v936 = vadd.f32 %v824, %v935
    %v937 = vpop.f32.mrb[0].mxu0
    %938 = vdwg.mxu0
    %939 = vst [vmem:[#allocation10] sm:$0xff] %v909
    %940 = vst [vmem:[#allocation10 + $0x8] sm:$0xff] %v912
    %941 = vst [vmem:[#allocation10 + $0x10] sm:$0xff] %v917
    %942 = vst [vmem:[#allocation10 + $0x18] sm:$0xff] %v920
    %943 = vst [vmem:[#allocation10 + $0x20] sm:$0xff] %v925
    %944 = vst [vmem:[#allocation10 + $0x28] sm:$0xff] %v928
    %945 = vst [vmem:[#allocation10 + $0x30] sm:$0xff] %v933
    %946 = vst [vmem:[#allocation10 + $0x38] sm:$0xff] %v936
    // Predicated region
    $region38: #{tpu_custom_call.1} parent=1 // pred_check
      _
    $region39: #{tpu_custom_call.1} parent=1 // pred_check_branch
      %948 = sbr.rel (0) target = $region41
    $region40: #{tpu_custom_call.1} parent=1 // pred_region
      %s950 = ssub.s32 1024, 1024
      %951 = vsyncadd [#allocation4], %s950
      %s952 = sshll.u32 [#allocation10], 4
      %s953 = int_to_ptr.vmem [resolvable:$true] %s952
      %958 = dma.vmem_to_hbm [thread:$0]  %s953, 1024, %s5, [#allocation4], 128, 128, 8
    $region41: #{tpu_custom_call.1} parent=1 // pred_fallthru
      _
    // Predicated region
    $region42: #{tpu_custom_call.1} parent=1 // pred_check
      _
    $region43: #{tpu_custom_call.1} parent=1 // pred_check_branch
      %960 = sbr.rel (0) target = $region45
    $region44: #{tpu_custom_call.1} parent=1 // pred_region
      %961 = dma.done [#allocation4], 1024
    $region45: #{tpu_custom_call.1} parent=1 // pred_fallthru
      _
    %962 = vsyncpa [#allocation3], 1
    %963 = vsyncpa [#allocation6], 1
    %964 = vsyncpa [#allocation9], 1
    %965 = vsyncpa [#allocation4], 1

</llo_original>
